<compile_context>
chip_gen: v7x
topology: tpu7x:2x2x1
jax: 0.10.0
libtpu: 0.0.40
codegen_flags: <defaults>
</compile_context>

<pallas_src>
import functools

import jax
import jax.numpy as jnp
from jax.experimental import pallas as pl
from jax.experimental.pallas import tpu as pltpu


def _tpavi_attn_kernel(
    x_ref,      # (1, tq, C)  f32   visual features, channels-last tile
    phi_ref,    # (1, T, Ci)  bf16  phi of the T distinct (aligned) audio rows
    g_ref,      # (1, T, Ci)  bf16  frame-pooled g(x), pre-scaled by 1/S
    wt_ref,     # (C, Ci)     bf16  theta 1x1x1-conv weight (transposed)
    bt_ref,     # (1, Ci)     f32
    wz_ref,     # (Ci, C)     bf16  W_z weight with eval-mode BatchNorm folded in
    bz_ref,     # (1, C)      f32   W_z bias with BatchNorm folded in
    lng_ref,    # (1, C)      f32   LayerNorm gamma
    lnb_ref,    # (1, C)      f32   LayerNorm beta
    out_ref,    # (1, tq, C)  f32
):
    x = x_ref[0]                                   # [tq, C] f32
    x_bf = x.astype(jnp.bfloat16)

    # theta: per-position 1x1x1 conv == tile matmul on the MXU (bf16 in, f32 acc).
    theta = jnp.dot(x_bf, wt_ref[...],
                    preferred_element_type=jnp.float32) + bt_ref[...]          # [tq, Ci]

    # f = theta @ phi^T  — attention collapsed over the H*W audio broadcast -> [tq, T]
    f = jax.lax.dot_general(
        theta.astype(jnp.bfloat16), phi_ref[0],
        (((1,), (1,)), ((), ())),
        preferred_element_type=jnp.float32)                                    # [tq, T]

    # y = (f / S) @ g_pooled   (the 1/S 'dot' scaling is already folded into g_pooled)
    y = jnp.dot(f.astype(jnp.bfloat16), g_ref[0],
                preferred_element_type=jnp.float32)                            # [tq, Ci]

    # W_z projection back to C channels (eval-mode BatchNorm3d folded into wz/bz).
    w_y = jnp.dot(y.astype(jnp.bfloat16), wz_ref[...],
                  preferred_element_type=jnp.float32) + bz_ref[...]            # [tq, C]

    # residual + LayerNorm over the channel (lane) dim.
    z = w_y + x
    mu = jnp.mean(z, axis=-1, keepdims=True)
    var = jnp.mean((z - mu) * (z - mu), axis=-1, keepdims=True)
    z_hat = (z - mu) * jax.lax.rsqrt(var + 1e-5)
    out_ref[0] = (z_hat * lng_ref[...] + lnb_ref[...]).astype(out_ref.dtype)


def tpavi_forward(x, audio, params, *, tq=512):
    """x: (N, C, T, H, W) f32, audio: (N, T, 128) f32.

    Returns (z in NCTHW layout, audio_temp [N, T, C]) — matching TPAVIModule.forward.
    """
    n, c, t, h, w = x.shape
    hw = h * w
    s = t * hw
    ci = params["wg"].shape[1]
    bf = jnp.bfloat16

    # ---- tiny plain-JAX glue (O(N*T*C)) + layout plumbing -----------------------------
    # channels-last slab; (t, h, w) flattening matches PyTorch's .view(N, C, -1).
    x_cl = jnp.transpose(x, (0, 2, 3, 4, 1)).reshape(n, s, c)                  # [N, S, C]

    # audio alignment (nn.Linear(128, C)) on the T distinct audio rows.
    audio_temp = audio @ params["w_align"] + params["b_align"]                 # [N, T, C]

    # phi on the T distinct rows (reference broadcasts audio over H*W before phi).
    phi = audio_temp @ params["wp"] + params["bp"]                             # [N, T, Ci]

    # frame-pooled g with the 1/S 'dot' scaling folded in:
    #   g_pool[t] = (1/S) * sum_{h,w} (x[t,h,w] @ Wg + bg)
    x_pool = x_cl.reshape(n, t, hw, c).sum(axis=2)                             # [N, T, C]
    g_pool = (x_pool @ params["wg"] + hw * params["bg"]) * (1.0 / s)           # [N, T, Ci]

    # fold eval-mode BatchNorm3d (running stats, eps=1e-5) into the W_z projection.
    bn_a = params["bn_gamma"] * jax.lax.rsqrt(params["bn_var"] + 1e-5)         # [1, C]
    wz_eff = params["wz"] * bn_a                                               # [Ci, C]
    bz_eff = (params["bz"] - params["bn_mean"]) * bn_a + params["bn_beta"]     # [1, C]

    # ---- tile the S axis --------------------------------------------------------------
    tq = max(8, min(int(tq), s))
    tq = ((tq + 7) // 8) * 8                       # sublane-aligned q tile
    s_pad = pl.cdiv(s, tq) * tq
    if s_pad != s:
        # row padding is safe: every output row depends only on its own x row plus the
        # (already computed, unpadded) phi / g_pool tables.
        x_cl = jnp.pad(x_cl, ((0, 0), (0, s_pad - s), (0, 0)))

    grid = (n, s_pad // tq)

    x_spec = pl.BlockSpec((1, tq, c), lambda b, i: (b, i, 0))
    out_spec = pl.BlockSpec((1, tq, c), lambda b, i: (b, i, 0))
    per_batch = lambda shp: pl.BlockSpec(shp, lambda b, i: (b, 0, 0))
    const2d = lambda shp: pl.BlockSpec(shp, lambda b, i: (0, 0))

    # explicit scoped-VMEM budget from the per-step tile footprint (double-buffered),
    # with headroom; capped well under v7x's 64 MiB physical VMEM.
    step_bytes = (
        2 * 2 * tq * c * 4                 # x + out tiles, f32, double-buffered
        + 2 * 2 * 2 * t * ci * 2           # phi + g_pool, bf16, double-buffered
        + 2 * 2 * c * ci * 2               # wt + wz, bf16
        + 2 * (ci + 3 * c) * 4             # biases + LN params, f32
    )
    vmem_limit = int(min(max(16 * 2**20, 2 * step_bytes), 48 * 2**20))

    out_cl = pl.pallas_call(
        _tpavi_attn_kernel,
        out_shape=jax.ShapeDtypeStruct((n, s_pad, c), jnp.float32),
        grid=grid,
        in_specs=[
            x_spec,                                    # x tile
            per_batch((1, t, ci)),                     # phi
            per_batch((1, t, ci)),                     # g_pool (1/S folded)
            const2d((c, ci)), const2d((1, ci)),        # theta weight / bias
            const2d((ci, c)), const2d((1, c)),         # W_z (BN folded) weight / bias
            const2d((1, c)), const2d((1, c)),          # LN gamma / beta
        ],
        out_specs=out_spec,
        compiler_params=pltpu.CompilerParams(
            dimension_semantics=("parallel", "parallel"),
            vmem_limit_bytes=vmem_limit,
        ),
    )(
        x_cl,
        phi.astype(bf), g_pool.astype(bf),
        params["wt"].astype(bf), params["bt"],
        wz_eff.astype(bf), bz_eff,
        params["ln_gamma"], params["ln_beta"],
    )

    out_cl = out_cl[:, :s]
    z = jnp.transpose(out_cl.reshape(n, t, h, w, c), (0, 4, 1, 2, 3))          # back to NCTHW
    return z, audio_temp


def init_params(key, in_channels, inter_channels):
    c, ci = in_channels, inter_channels
    ks = jax.random.split(key, 10)
    scale = 0.05
    return {
        # align_channel: nn.Linear(128, C) (stored transposed: [128, C])
        "w_align": scale * jax.random.normal(ks[0], (128, c), jnp.float32),
        "b_align": scale * jax.random.normal(ks[1], (c,), jnp.float32),
        # 1x1x1 convs, weights stored transposed for x @ W
        "wg": scale * jax.random.normal(ks[2], (c, ci), jnp.float32),
        "bg": scale * jax.random.normal(ks[3], (1, ci), jnp.float32),
        "wt": scale * jax.random.normal(ks[4], (c, ci), jnp.float32),
        "bt": scale * jax.random.normal(ks[5], (1, ci), jnp.float32),
        "wp": scale * jax.random.normal(ks[6], (c, ci), jnp.float32),
        "bp": scale * jax.random.normal(ks[7], (1, ci), jnp.float32),
        # W_z = Conv3d(Ci, C, 1) followed by BatchNorm3d whose weight/bias are
        # zero-initialized in the module __init__ (faithful: W_y == 0 at init).
        "wz": scale * jax.random.normal(ks[8], (ci, c), jnp.float32),
        "bz": scale * jax.random.normal(ks[9], (1, c), jnp.float32),
        "bn_gamma": jnp.zeros((1, c), jnp.float32),
        "bn_beta": jnp.zeros((1, c), jnp.float32),
        "bn_mean": jnp.zeros((1, c), jnp.float32),
        "bn_var": jnp.ones((1, c), jnp.float32),
        # LayerNorm(C) default init
        "ln_gamma": jnp.ones((1, c), jnp.float32),
        "ln_beta": jnp.zeros((1, c), jnp.float32),
    }


if __name__ == "__main__":
    # Small shapes consistent with TPAVIModule(dimension=3, mode='dot'):
    # lane-dense C=128, Ci=C//2, S = T*H*W = 256, tiled with tq=128 -> grid (2, 2).
    N, C, T, H, W = 2, 128, 4, 8, 8
    Ci = C // 2

    key = jax.random.PRNGKey(0)
    kx, ka, kp = jax.random.split(key, 3)
    x = jax.random.normal(kx, (N, C, T, H, W), jnp.float32)
    audio = jax.random.normal(ka, (N, T, 128), jnp.float32)
    params = init_params(kp, C, Ci)

    fwd = jax.jit(functools.partial(tpavi_forward, tq=128))
    z, audio_temp = fwd(x, audio, params)
    jax.block_until_ready(z)
    jax.block_until_ready(audio_temp)

    assert z.shape == (N, C, T, H, W), z.shape
    assert audio_temp.shape == (N, T, C), audio_temp.shape
    assert bool(jnp.all(jnp.isfinite(z))), "non-finite output"
    print("KERNEL_OK")
</pallas_src>

<mosaic_0001>
module attributes {stable_mosaic.version = 11 : i64} {
  func.func @_tpavi_attn_kernel(%arg0: i32, %arg1: i32, %arg2: memref<1x128x128xf32, #tpu.memory_space<vmem>>, %arg3: memref<1x4x64xbf16, #tpu.memory_space<vmem>>, %arg4: memref<1x4x64xbf16, #tpu.memory_space<vmem>>, %arg5: memref<128x64xbf16, #tpu.memory_space<vmem>>, %arg6: memref<1x64xf32, #tpu.memory_space<vmem>>, %arg7: memref<64x128xbf16, #tpu.memory_space<vmem>>, %arg8: memref<1x128xf32, #tpu.memory_space<vmem>>, %arg9: memref<1x128xf32, #tpu.memory_space<vmem>>, %arg10: memref<1x128xf32, #tpu.memory_space<vmem>>, %arg11: memref<1x128x128xf32, #tpu.memory_space<vmem>>) attributes {dimension_semantics = [#tpu.dimension_semantics<parallel>, #tpu.dimension_semantics<parallel>], iteration_bounds = array<i64: 2, 2>, scalar_prefetch = 0 : i64, scratch_operands = 0 : i64, tpu.core_type = #tpu.core_type<tc>, window_params = [{transform_indices = @transform_0, window_bounds = array<i64: 1, 128, 128>}, {transform_indices = @transform_1, window_bounds = array<i64: 1, 4, 64>}, {transform_indices = @transform_2, window_bounds = array<i64: 1, 4, 64>}, {pipeline_mode = #tpu.pipeline_mode<synchronous>, transform_indices = @transform_3, window_bounds = array<i64: 128, 64>}, {pipeline_mode = #tpu.pipeline_mode<synchronous>, transform_indices = @transform_4, window_bounds = array<i64: 1, 64>}, {pipeline_mode = #tpu.pipeline_mode<synchronous>, transform_indices = @transform_5, window_bounds = array<i64: 64, 128>}, {pipeline_mode = #tpu.pipeline_mode<synchronous>, transform_indices = @transform_6, window_bounds = array<i64: 1, 128>}, {pipeline_mode = #tpu.pipeline_mode<synchronous>, transform_indices = @transform_7, window_bounds = array<i64: 1, 128>}, {pipeline_mode = #tpu.pipeline_mode<synchronous>, transform_indices = @transform_8, window_bounds = array<i64: 1, 128>}, {transform_indices = @transform_9, window_bounds = array<i64: 1, 128, 128>}]} {
    %c0 = arith.constant 0 : index
    %c0_0 = arith.constant 0 : index
    %c0_1 = arith.constant 0 : index
    %0 = vector.load %arg2[%c0, %c0_0, %c0_1] : memref<1x128x128xf32, #tpu.memory_space<vmem>>, vector<1x128x128xf32>
    %1 = vector.shape_cast %0 : vector<1x128x128xf32> to vector<128x128xf32>
    %2 = arith.truncf %1 : vector<128x128xf32> to vector<128x128xbf16>
    %c0_2 = arith.constant 0 : index
    %c0_3 = arith.constant 0 : index
    %3 = vector.load %arg5[%c0_2, %c0_3] : memref<128x64xbf16, #tpu.memory_space<vmem>>, vector<128x64xbf16>
    %cst = arith.constant dense<0.000000e+00> : vector<128x64xf32>
    %4 = tpu.matmul %2, %3, %cst {dimension_numbers = #tpu.dot_dimension_numbers<[1], [0], [0], [1], [0, 0, 1, 1], [], []>} : vector<128x128xbf16>, vector<128x64xbf16>, vector<128x64xf32> -> vector<128x64xf32>
    %c0_4 = arith.constant 0 : index
    %c0_5 = arith.constant 0 : index
    %5 = vector.load %arg6[%c0_4, %c0_5] : memref<1x64xf32, #tpu.memory_space<vmem>>, vector<1x64xf32>
    %6 = vector.broadcast %5 : vector<1x64xf32> to vector<128x64xf32>
    %7 = arith.addf %4, %6 : vector<128x64xf32>
    %8 = arith.truncf %7 : vector<128x64xf32> to vector<128x64xbf16>
    %c0_6 = arith.constant 0 : index
    %c0_7 = arith.constant 0 : index
    %c0_8 = arith.constant 0 : index
    %9 = vector.load %arg3[%c0_6, %c0_7, %c0_8] : memref<1x4x64xbf16, #tpu.memory_space<vmem>>, vector<1x4x64xbf16>
    %10 = vector.shape_cast %9 : vector<1x4x64xbf16> to vector<4x64xbf16>
    %cst_9 = arith.constant dense<0.000000e+00> : vector<128x4xf32>
    %11 = tpu.matmul %8, %10, %cst_9 {dimension_numbers = #tpu.dot_dimension_numbers<[1], [1], [0], [0], [0, 0, 1, 0], [], []>} : vector<128x64xbf16>, vector<4x64xbf16>, vector<128x4xf32> -> vector<128x4xf32>
    %12 = arith.truncf %11 : vector<128x4xf32> to vector<128x4xbf16>
    %c0_10 = arith.constant 0 : index
    %c0_11 = arith.constant 0 : index
    %c0_12 = arith.constant 0 : index
    %13 = vector.load %arg4[%c0_10, %c0_11, %c0_12] : memref<1x4x64xbf16, #tpu.memory_space<vmem>>, vector<1x4x64xbf16>
    %14 = vector.shape_cast %13 : vector<1x4x64xbf16> to vector<4x64xbf16>
    %cst_13 = arith.constant dense<0.000000e+00> : vector<128x64xf32>
    %15 = tpu.matmul %12, %14, %cst_13 {dimension_numbers = #tpu.dot_dimension_numbers<[1], [0], [0], [1], [0, 0, 1, 1], [], []>} : vector<128x4xbf16>, vector<4x64xbf16>, vector<128x64xf32> -> vector<128x64xf32>
    %16 = arith.truncf %15 : vector<128x64xf32> to vector<128x64xbf16>
    %c0_14 = arith.constant 0 : index
    %c0_15 = arith.constant 0 : index
    %17 = vector.load %arg7[%c0_14, %c0_15] : memref<64x128xbf16, #tpu.memory_space<vmem>>, vector<64x128xbf16>
    %cst_16 = arith.constant dense<0.000000e+00> : vector<128x128xf32>
    %18 = tpu.matmul %16, %17, %cst_16 {dimension_numbers = #tpu.dot_dimension_numbers<[1], [0], [0], [1], [0, 0, 1, 1], [], []>} : vector<128x64xbf16>, vector<64x128xbf16>, vector<128x128xf32> -> vector<128x128xf32>
    %c0_17 = arith.constant 0 : index
    %c0_18 = arith.constant 0 : index
    %19 = vector.load %arg8[%c0_17, %c0_18] : memref<1x128xf32, #tpu.memory_space<vmem>>, vector<1x128xf32>
    %20 = vector.broadcast %19 : vector<1x128xf32> to vector<128x128xf32>
    %21 = arith.addf %18, %20 : vector<128x128xf32>
    %22 = arith.addf %21, %1 : vector<128x128xf32>
    %cst_19 = arith.constant dense<0.000000e+00> : vector<128xf32>
    %23 = vector.multi_reduction <add>, %22, %cst_19 [1] : vector<128x128xf32> to vector<128xf32>
    %24 = vector.shape_cast %23 : vector<128xf32> to vector<128x1xf32>
    %cst_20 = arith.constant 1.280000e+02 : f32
    %25 = vector.broadcast %cst_20 : f32 to vector<128x1xf32>
    %26 = arith.divf %24, %25 : vector<128x1xf32>
    %27 = vector.broadcast %26 : vector<128x1xf32> to vector<128x128xf32>
    %28 = arith.subf %22, %27 : vector<128x128xf32>
    %29 = vector.broadcast %26 : vector<128x1xf32> to vector<128x128xf32>
    %30 = arith.subf %22, %29 : vector<128x128xf32>
    %31 = arith.mulf %28, %30 : vector<128x128xf32>
    %cst_21 = arith.constant dense<0.000000e+00> : vector<128xf32>
    %32 = vector.multi_reduction <add>, %31, %cst_21 [1] : vector<128x128xf32> to vector<128xf32>
    %33 = vector.shape_cast %32 : vector<128xf32> to vector<128x1xf32>
    %cst_22 = arith.constant 1.280000e+02 : f32
    %34 = vector.broadcast %cst_22 : f32 to vector<128x1xf32>
    %35 = arith.divf %33, %34 : vector<128x1xf32>
    %36 = vector.broadcast %26 : vector<128x1xf32> to vector<128x128xf32>
    %37 = arith.subf %22, %36 : vector<128x128xf32>
    %cst_23 = arith.constant 9.99999974E-6 : f32
    %38 = vector.broadcast %cst_23 : f32 to vector<128x1xf32>
    %39 = arith.addf %35, %38 : vector<128x1xf32>
    %40 = math.rsqrt %39 : vector<128x1xf32>
    %41 = vector.broadcast %40 : vector<128x1xf32> to vector<128x128xf32>
    %42 = arith.mulf %37, %41 : vector<128x128xf32>
    %c0_24 = arith.constant 0 : index
    %c0_25 = arith.constant 0 : index
    %43 = vector.load %arg9[%c0_24, %c0_25] : memref<1x128xf32, #tpu.memory_space<vmem>>, vector<1x128xf32>
    %44 = vector.broadcast %43 : vector<1x128xf32> to vector<128x128xf32>
    %45 = arith.mulf %42, %44 : vector<128x128xf32>
    %c0_26 = arith.constant 0 : index
    %c0_27 = arith.constant 0 : index
    %46 = vector.load %arg10[%c0_26, %c0_27] : memref<1x128xf32, #tpu.memory_space<vmem>>, vector<1x128xf32>
    %47 = vector.broadcast %46 : vector<1x128xf32> to vector<128x128xf32>
    %48 = arith.addf %45, %47 : vector<128x128xf32>
    %c0_28 = arith.constant 0 : index
    %c0_29 = arith.constant 0 : index
    %c0_30 = arith.constant 0 : index
    %49 = vector.load %arg11[%c0_28, %c0_29, %c0_30] : memref<1x128x128xf32, #tpu.memory_space<vmem>>, vector<1x128x128xf32>
    %50 = vector.shape_cast %49 : vector<1x128x128xf32> to vector<128x128xf32>
    %51 = vector.shape_cast %48 : vector<128x128xf32> to vector<1x128x128xf32>
    tpu.vector_store %arg11[%c0_28, %c0_29, %c0_30], %51 {strides = array<i32>} : memref<1x128x128xf32, #tpu.memory_space<vmem>>, vector<1x128x128xf32>,
    return
  }
  func.func @transform_0(%arg0: i32, %arg1: i32) -> (i32, i32, i32) {
    %c0_i32 = arith.constant 0 : i32
    %c0_i32_0 = arith.constant 0 : i32
    return %arg0, %arg1, %c0_i32 : i32, i32, i32
  }
  func.func @transform_1(%arg0: i32, %arg1: i32) -> (i32, i32, i32) {
    %c0_i32 = arith.constant 0 : i32
    %c0_i32_0 = arith.constant 0 : i32
    %c0_i32_1 = arith.constant 0 : i32
    return %arg0, %c0_i32, %c0_i32_0 : i32, i32, i32
  }
  func.func @transform_2(%arg0: i32, %arg1: i32) -> (i32, i32, i32) {
    %c0_i32 = arith.constant 0 : i32
    %c0_i32_0 = arith.constant 0 : i32
    %c0_i32_1 = arith.constant 0 : i32
    return %arg0, %c0_i32, %c0_i32_0 : i32, i32, i32
  }
  func.func @transform_3(%arg0: i32, %arg1: i32) -> (i32, i32) {
    %c0_i32 = arith.constant 0 : i32
    %c0_i32_0 = arith.constant 0 : i32
    %c0_i32_1 = arith.constant 0 : i32
    return %c0_i32, %c0_i32_0 : i32, i32
  }
  func.func @transform_4(%arg0: i32, %arg1: i32) -> (i32, i32) {
    %c0_i32 = arith.constant 0 : i32
    %c0_i32_0 = arith.constant 0 : i32
    %c0_i32_1 = arith.constant 0 : i32
    return %c0_i32, %c0_i32_0 : i32, i32
  }
  func.func @transform_5(%arg0: i32, %arg1: i32) -> (i32, i32) {
    %c0_i32 = arith.constant 0 : i32
    %c0_i32_0 = arith.constant 0 : i32
    %c0_i32_1 = arith.constant 0 : i32
    return %c0_i32, %c0_i32_0 : i32, i32
  }
  func.func @transform_6(%arg0: i32, %arg1: i32) -> (i32, i32) {
    %c0_i32 = arith.constant 0 : i32
    %c0_i32_0 = arith.constant 0 : i32
    %c0_i32_1 = arith.constant 0 : i32
    return %c0_i32, %c0_i32_0 : i32, i32
  }
  func.func @transform_7(%arg0: i32, %arg1: i32) -> (i32, i32) {
    %c0_i32 = arith.constant 0 : i32
    %c0_i32_0 = arith.constant 0 : i32
    %c0_i32_1 = arith.constant 0 : i32
    return %c0_i32, %c0_i32_0 : i32, i32
  }
  func.func @transform_8(%arg0: i32, %arg1: i32) -> (i32, i32) {
    %c0_i32 = arith.constant 0 : i32
    %c0_i32_0 = arith.constant 0 : i32
    %c0_i32_1 = arith.constant 0 : i32
    return %c0_i32, %c0_i32_0 : i32, i32
  }
  func.func @transform_9(%arg0: i32, %arg1: i32) -> (i32, i32, i32) {
    %c0_i32 = arith.constant 0 : i32
    %c0_i32_0 = arith.constant 0 : i32
    return %arg0, %arg1, %c0_i32 : i32, i32, i32
  }
}

</mosaic_0001>

<llo_original>
// kernel: tpavi_forward.1
$region0: #{tpavi_forward.1}
  #allocation0 [shape = 'u32[]', space=smem, size = 0x4, offset = 0x4, fixed_abs, tag = 'smem constant byte address 0x4 - core index']
  #allocation1 [shape = 'u32[144,128]{1,0:T(1,128)}', space=vmem, size = 0x12000, scoped, tag = 'internal scratch']
  %s0 = inlined_call_operand.vmem [shape: f32[2,256,128], index: 0, kind: input, shape index: {}]
  %s1 = inlined_call_operand.vmem [shape: bf16[2,4,64], index: 1, kind: input, shape index: {}]
  %s2 = inlined_call_operand.vmem [shape: bf16[2,4,64], index: 2, kind: input, shape index: {}]
  %s3 = inlined_call_operand.vmem [shape: bf16[128,64], index: 3, kind: input, shape index: {}]
  %s4 = inlined_call_operand.vmem [shape: f32[1,64], index: 4, kind: input, shape index: {}]
  %s5 = inlined_call_operand.vmem [shape: bf16[64,128], index: 5, kind: input, shape index: {}]
  %s6 = inlined_call_operand.vmem [shape: f32[1,128], index: 6, kind: input, shape index: {}]
  %s7 = inlined_call_operand.vmem [shape: f32[1,128], index: 7, kind: input, shape index: {}]
  %s8 = inlined_call_operand.vmem [shape: f32[1,128], index: 8, kind: input, shape index: {}]
  %s9 = inlined_call_operand.hbm [shape: f32[2,256,128], index: 9, kind: output, shape index: {}]
  %s10 = sld [smem:[#allocation0]]
  $region69: #{tpavi_forward.1} parent=0
    _
  %s12 = ssub.s32 1, %s10
  %s13 = scalar_select 0, %s12, %s10
  $region1: #{tpavi_forward.1} parent=0
    #allocation2 [shape = 'u8[131072]{0}', space=vmem, size = 0x20000, scoped, tag = 'output window, operand 0']
    #allocation3 [shape = 's32[2]{0}', space=sflag, size = 0x8, scoped, tag = 'scoped memory for tpavi_forward.1']
    %14 = vsyncpa [#allocation3], 0
    %s15 = scalar_lea.sflag [#allocation3], 1
    %16 = vsyncpa %s15, 0
    loop: start=0, step=1, limit=6
    $region2: #{tpavi_forward.1} parent=1 // loop_pre_header
      _
    $region3: #{tpavi_forward.1} parent=1 // loop_header
      %s18 = sphi 0, %s22
      %p19 = scmp.ge.s32.totalorder %s18, 6
      %s25 = sphi 0, %s37
      %s26 = sphi 0, %s33
      %s27 = sphi 0, %s25
      %s28 = sphi 0, %s26
      %s29 = sphi 0, %s27
      %s30 = sphi 0, %s28
      %s42 = sphi 0, %s44
      %s45 = sphi 0, %s42
      %s46 = sphi 0, %s45
      %s62 = sphi 0, %s46
      %s68 = sphi 0, %s70
      %s71 = sphi 0, %s68
      %s72 = sphi 0, %s71
      %s88 = sphi 0, %s72
      %s94 = sphi 0, %s96
      %s97 = sphi 0, %s94
      %s98 = sphi 0, %s97
      %s114 = sphi 0, %s98
      %s118 = sphi 0, %s118
      %s120 = sphi 0, %s118
      %s121 = sphi 0, %s120
      %s135 = sphi 0, %s121
      %s139 = sphi 0, %s139
      %s141 = sphi 0, %s139
      %s142 = sphi 0, %s141
      %s156 = sphi 0, %s142
      %s160 = sphi 0, %s160
      %s162 = sphi 0, %s160
      %s163 = sphi 0, %s162
      %s177 = sphi 0, %s163
      %s181 = sphi 0, %s181
      %s183 = sphi 0, %s181
      %s184 = sphi 0, %s183
      %s198 = sphi 0, %s184
      %s202 = sphi 0, %s202
      %s204 = sphi 0, %s202
      %s205 = sphi 0, %s204
      %s219 = sphi 0, %s205
      %s223 = sphi 0, %s223
      %s225 = sphi 0, %s223
      %s226 = sphi 0, %s225
      %s240 = sphi 0, %s226
      %s248 = sphi 0, %s250
      %s251 = sphi 0, %s248
      %s252 = sphi 0, %s251
      %s268 = sphi 0, %s252
    $region4: #{tpavi_forward.1} parent=1 // loop_header_branch
      %21 = sbr.rel (%p19) target = $region8
    $region5: #{tpavi_forward.1} parent=1 // loop_body
      %s23 = ssub.s32 %s18, 1
      %s24 = ssub.s32 %s18, 2
      %s31 = sadd.s32 1, %s26
      %p32 = scmp.ge.s32.totalorder %s31, 2
      %s33 = scalar_select %p32, 0, %s31
      %s34 = sadd.s32 1, %s25
      %s35 = scalar_select %p32, %s34, %s25
      %p36 = scmp.ge.s32.totalorder %s35, 2
      %s37 = scalar_select %p36, 0, %s35
      %s38 = ssub.s32 %s25, %s37
      %s39 = ssub.s32 %s26, %s33
      %s40 = sor.u32 %s38, %s39
      %p41 = scmp.eq.s32.totalorder %s40, 0
      %s43 = sadd.s32 %s42, 1
      %s44 = scalar_select %p41, %s42, %s43
      %p47 = pneg %p41
      %p48 = scmp.eq.s32.totalorder %s18, 3
      %p49 = por %p47, %p48
      %p50 = scmp.ne.s32.totalorder %s42, %s45
      %p51 = scmp.eq.s32.totalorder %s18, 0
      %p52 = por %p50, %p51
      %p53 = scmp.ne.s32.totalorder %s42, %s45
      %p54 = scmp.eq.s32.totalorder %s23, 3
      %p55 = por %p53, %p54
      %p56 = scmp.ne.s32.totalorder %s45, %s46
      %p57 = scmp.eq.s32.totalorder %s23, 0
      %p58 = por %p56, %p57
      %p59 = scmp.ne.s32.totalorder %s45, %s46
      %p60 = scmp.eq.s32.totalorder %s24, 3
      %p61 = por %p59, %p60
      %p63 = scmp.ne.s32.totalorder %s46, %s62
      %p64 = scmp.eq.s32.totalorder %s24, 0
      %p65 = por %p63, %p64
      %s66 = ssub.s32 %s25, %s37
      %p67 = scmp.eq.s32.totalorder %s66, 0
      %s69 = sadd.s32 %s68, 1
      %s70 = scalar_select %p67, %s68, %s69
      %p73 = pneg %p67
      %p74 = scmp.eq.s32.totalorder %s18, 3
      %p75 = por %p73, %p74
      %p76 = scmp.ne.s32.totalorder %s68, %s71
      %p77 = scmp.eq.s32.totalorder %s18, 0
      %p78 = por %p76, %p77
      %p79 = scmp.ne.s32.totalorder %s68, %s71
      %p80 = scmp.eq.s32.totalorder %s23, 3
      %p81 = por %p79, %p80
      %p82 = scmp.ne.s32.totalorder %s71, %s72
      %p83 = scmp.eq.s32.totalorder %s23, 0
      %p84 = por %p82, %p83
      %p85 = scmp.ne.s32.totalorder %s71, %s72
      %p86 = scmp.eq.s32.totalorder %s24, 3
      %p87 = por %p85, %p86
      %p89 = scmp.ne.s32.totalorder %s72, %s88
      %p90 = scmp.eq.s32.totalorder %s24, 0
      %p91 = por %p89, %p90
      %s92 = ssub.s32 %s25, %s37
      %p93 = scmp.eq.s32.totalorder %s92, 0
      %s95 = sadd.s32 %s94, 1
      %s96 = scalar_select %p93, %s94, %s95
      %p99 = pneg %p93
      %p100 = scmp.eq.s32.totalorder %s18, 3
      %p101 = por %p99, %p100
      %p102 = scmp.ne.s32.totalorder %s94, %s97
      %p103 = scmp.eq.s32.totalorder %s18, 0
      %p104 = por %p102, %p103
      %p105 = scmp.ne.s32.totalorder %s94, %s97
      %p106 = scmp.eq.s32.totalorder %s23, 3
      %p107 = por %p105, %p106
      %p108 = scmp.ne.s32.totalorder %s97, %s98
      %p109 = scmp.eq.s32.totalorder %s23, 0
      %p110 = por %p108, %p109
      %p111 = scmp.ne.s32.totalorder %s97, %s98
      %p112 = scmp.eq.s32.totalorder %s24, 3
      %p113 = por %p111, %p112
      %p115 = scmp.ne.s32.totalorder %s98, %s114
      %p116 = scmp.eq.s32.totalorder %s24, 0
      %p117 = por %p115, %p116
      %s119 = sadd.s32 %s118, 1
      %p122 = scmp.eq.s32.totalorder %s18, 3
      %p123 = scmp.ne.s32.totalorder %s118, %s120
      %p124 = scmp.eq.s32.totalorder %s18, 0
      %p125 = por %p123, %p124
      %p126 = scmp.ne.s32.totalorder %s118, %s120
      %p127 = scmp.eq.s32.totalorder %s23, 3
      %p128 = por %p126, %p127
      %p129 = scmp.ne.s32.totalorder %s120, %s121
      %p130 = scmp.eq.s32.totalorder %s23, 0
      %p131 = por %p129, %p130
      %p132 = scmp.ne.s32.totalorder %s120, %s121
      %p133 = scmp.eq.s32.totalorder %s24, 3
      %p134 = por %p132, %p133
      %p136 = scmp.ne.s32.totalorder %s121, %s135
      %p137 = scmp.eq.s32.totalorder %s24, 0
      %p138 = por %p136, %p137
      %s140 = sadd.s32 %s139, 1
      %p143 = scmp.eq.s32.totalorder %s18, 3
      %p144 = scmp.ne.s32.totalorder %s139, %s141
      %p145 = scmp.eq.s32.totalorder %s18, 0
      %p146 = por %p144, %p145
      %p147 = scmp.ne.s32.totalorder %s139, %s141
      %p148 = scmp.eq.s32.totalorder %s23, 3
      %p149 = por %p147, %p148
      %p150 = scmp.ne.s32.totalorder %s141, %s142
      %p151 = scmp.eq.s32.totalorder %s23, 0
      %p152 = por %p150, %p151
      %p153 = scmp.ne.s32.totalorder %s141, %s142
      %p154 = scmp.eq.s32.totalorder %s24, 3
      %p155 = por %p153, %p154
      %p157 = scmp.ne.s32.totalorder %s142, %s156
      %p158 = scmp.eq.s32.totalorder %s24, 0
      %p159 = por %p157, %p158
      %s161 = sadd.s32 %s160, 1
      %p164 = scmp.eq.s32.totalorder %s18, 3
      %p165 = scmp.ne.s32.totalorder %s160, %s162
      %p166 = scmp.eq.s32.totalorder %s18, 0
      %p167 = por %p165, %p166
      %p168 = scmp.ne.s32.totalorder %s160, %s162
      %p169 = scmp.eq.s32.totalorder %s23, 3
      %p170 = por %p168, %p169
      %p171 = scmp.ne.s32.totalorder %s162, %s163
      %p172 = scmp.eq.s32.totalorder %s23, 0
      %p173 = por %p171, %p172
      %p174 = scmp.ne.s32.totalorder %s162, %s163
      %p175 = scmp.eq.s32.totalorder %s24, 3
      %p176 = por %p174, %p175
      %p178 = scmp.ne.s32.totalorder %s163, %s177
      %p179 = scmp.eq.s32.totalorder %s24, 0
      %p180 = por %p178, %p179
      %s182 = sadd.s32 %s181, 1
      %p185 = scmp.eq.s32.totalorder %s18, 3
      %p186 = scmp.ne.s32.totalorder %s181, %s183
      %p187 = scmp.eq.s32.totalorder %s18, 0
      %p188 = por %p186, %p187
      %p189 = scmp.ne.s32.totalorder %s181, %s183
      %p190 = scmp.eq.s32.totalorder %s23, 3
      %p191 = por %p189, %p190
      %p192 = scmp.ne.s32.totalorder %s183, %s184
      %p193 = scmp.eq.s32.totalorder %s23, 0
      %p194 = por %p192, %p193
      %p195 = scmp.ne.s32.totalorder %s183, %s184
      %p196 = scmp.eq.s32.totalorder %s24, 3
      %p197 = por %p195, %p196
      %p199 = scmp.ne.s32.totalorder %s184, %s198
      %p200 = scmp.eq.s32.totalorder %s24, 0
      %p201 = por %p199, %p200
      %s203 = sadd.s32 %s202, 1
      %p206 = scmp.eq.s32.totalorder %s18, 3
      %p207 = scmp.ne.s32.totalorder %s202, %s204
      %p208 = scmp.eq.s32.totalorder %s18, 0
      %p209 = por %p207, %p208
      %p210 = scmp.ne.s32.totalorder %s202, %s204
      %p211 = scmp.eq.s32.totalorder %s23, 3
      %p212 = por %p210, %p211
      %p213 = scmp.ne.s32.totalorder %s204, %s205
      %p214 = scmp.eq.s32.totalorder %s23, 0
      %p215 = por %p213, %p214
      %p216 = scmp.ne.s32.totalorder %s204, %s205
      %p217 = scmp.eq.s32.totalorder %s24, 3
      %p218 = por %p216, %p217
      %p220 = scmp.ne.s32.totalorder %s205, %s219
      %p221 = scmp.eq.s32.totalorder %s24, 0
      %p222 = por %p220, %p221
      %s224 = sadd.s32 %s223, 1
      %p227 = scmp.eq.s32.totalorder %s18, 3
      %p228 = scmp.ne.s32.totalorder %s223, %s225
      %p229 = scmp.eq.s32.totalorder %s18, 0
      %p230 = por %p228, %p229
      %p231 = scmp.ne.s32.totalorder %s223, %s225
      %p232 = scmp.eq.s32.totalorder %s23, 3
      %p233 = por %p231, %p232
      %p234 = scmp.ne.s32.totalorder %s225, %s226
      %p235 = scmp.eq.s32.totalorder %s23, 0
      %p236 = por %p234, %p235
      %p237 = scmp.ne.s32.totalorder %s225, %s226
      %p238 = scmp.eq.s32.totalorder %s24, 3
      %p239 = por %p237, %p238
      %p241 = scmp.ne.s32.totalorder %s226, %s240
      %p242 = scmp.eq.s32.totalorder %s24, 0
      %p243 = por %p241, %p242
      %s244 = ssub.s32 %s25, %s37
      %s245 = ssub.s32 %s26, %s33
      %s246 = sor.u32 %s244, %s245
      %p247 = scmp.eq.s32.totalorder %s246, 0
      %s249 = sadd.s32 %s248, 1
      %s250 = scalar_select %p247, %s248, %s249
      %p253 = pneg %p247
      %p254 = scmp.eq.s32.totalorder %s18, 3
      %p255 = por %p253, %p254
      %p256 = scmp.ne.s32.totalorder %s248, %s251
      %p257 = scmp.eq.s32.totalorder %s18, 0
      %p258 = por %p256, %p257
      %p259 = scmp.ne.s32.totalorder %s248, %s251
      %p260 = scmp.eq.s32.totalorder %s23, 3
      %p261 = por %p259, %p260
      %p262 = scmp.ne.s32.totalorder %s251, %s252
      %p263 = scmp.eq.s32.totalorder %s23, 0
      %p264 = por %p262, %p263
      %p265 = scmp.ne.s32.totalorder %s251, %s252
      %p266 = scmp.eq.s32.totalorder %s24, 3
      %p267 = por %p265, %p266
      %p269 = scmp.ne.s32.totalorder %s252, %s268
      %p270 = scmp.eq.s32.totalorder %s24, 0
      %p271 = por %p269, %p270
      %p272 = scmp.le.s32.totalorder 1, %s18
      %p273 = scmp.lt.s32.totalorder %s18, 5
      %p274 = pnand %p272, %p273
      %p275 = pneg %p274
      // Predicated region
      $region9: #{tpavi_forward.1} parent=5 // pred_check
        _
      $region10: #{tpavi_forward.1} parent=5 // pred_check_branch
        %277 = sbr.rel (%p274) target = $region12
      $region11: #{tpavi_forward.1} parent=5 // pred_region
        %s278 = ssub.s32 %s18, 1
        // Predicated region
        $region13: #{tpavi_forward.1} parent=11 // pred_check
          %p279 = pneg %p131
        $region14: #{tpavi_forward.1} parent=11 // pred_check_branch
          %281 = sbr.rel (%p279) target = $region16
        $region15: #{tpavi_forward.1} parent=11 // pred_region
          _
        $region16: #{tpavi_forward.1} parent=11 // pred_fallthru
          _
        // Predicated region
        $region17: #{tpavi_forward.1} parent=11 // pred_check
          %p282 = pneg %p152
        $region18: #{tpavi_forward.1} parent=11 // pred_check_branch
          %284 = sbr.rel (%p282) target = $region20
        $region19: #{tpavi_forward.1} parent=11 // pred_region
          _
        $region20: #{tpavi_forward.1} parent=11 // pred_fallthru
          _
        // Predicated region
        $region21: #{tpavi_forward.1} parent=11 // pred_check
          %p285 = pneg %p173
        $region22: #{tpavi_forward.1} parent=11 // pred_check_branch
          %287 = sbr.rel (%p285) target = $region24
        $region23: #{tpavi_forward.1} parent=11 // pred_region
          _
        $region24: #{tpavi_forward.1} parent=11 // pred_fallthru
          _
        // Predicated region
        $region25: #{tpavi_forward.1} parent=11 // pred_check
          %p288 = pneg %p194
        $region26: #{tpavi_forward.1} parent=11 // pred_check_branch
          %290 = sbr.rel (%p288) target = $region28
        $region27: #{tpavi_forward.1} parent=11 // pred_region
          _
        $region28: #{tpavi_forward.1} parent=11 // pred_fallthru
          _
        // Predicated region
        $region29: #{tpavi_forward.1} parent=11 // pred_check
          %p291 = pneg %p215
        $region30: #{tpavi_forward.1} parent=11 // pred_check_branch
          %293 = sbr.rel (%p291) target = $region32
        $region31: #{tpavi_forward.1} parent=11 // pred_region
          _
        $region32: #{tpavi_forward.1} parent=11 // pred_fallthru
          _
        // Predicated region
        $region33: #{tpavi_forward.1} parent=11 // pred_check
          %p294 = pneg %p236
        $region34: #{tpavi_forward.1} parent=11 // pred_check_branch
          %296 = sbr.rel (%p294) target = $region36
        $region35: #{tpavi_forward.1} parent=11 // pred_region
          _
        $region36: #{tpavi_forward.1} parent=11 // pred_fallthru
          _
      $region12: #{tpavi_forward.1} parent=5 // pred_fallthru
        _
      %p297 = scmp.lt.s32.totalorder %s18, 4
      // Predicated region
      $region37: #{tpavi_forward.1} parent=5 // pred_check
        %p298 = pneg %p297
      $region38: #{tpavi_forward.1} parent=5 // pred_check_branch
        %300 = sbr.rel (%p298) target = $region40
      $region39: #{tpavi_forward.1} parent=5 // pred_region
        // Predicated region
        $region41: #{tpavi_forward.1} parent=39 // pred_check
          %p301 = pneg %p52
        $region42: #{tpavi_forward.1} parent=39 // pred_check_branch
          %303 = sbr.rel (%p301) target = $region44
        $region43: #{tpavi_forward.1} parent=39 // pred_region
          %s304 = smul.u32 16, %s26
          %p305 = scmp.lt.s32.totalorder %s25, 1
          %s306 = scalar_select %p305, %s25, 1
          %p307 = scmp.lt.s32.totalorder %s304, 31
          %s308 = scalar_select %p307, %s304, 31
          %s309 = smul.addr %s306, 32
          %s310 = sadd.s32 %s308, %s309
          %s311 = smul.addr %s310, 8
          %s312 = scalar_lea.vmem %s0, %s311
          %s313 = smul.u32 16, %s26
        $region44: #{tpavi_forward.1} parent=39 // pred_fallthru
          _
        // Predicated region
        $region45: #{tpavi_forward.1} parent=39 // pred_check
          %p314 = pneg %p78
        $region46: #{tpavi_forward.1} parent=39 // pred_check_branch
          %316 = sbr.rel (%p314) target = $region48
        $region47: #{tpavi_forward.1} parent=39 // pred_region
          %p317 = scmp.lt.s32.totalorder %s25, 1
          %s318 = scalar_select %p317, %s25, 1
          %s319 = smul.addr %s318, 2
          %s320 = scalar_lea.vmem %s1, %s319
        $region48: #{tpavi_forward.1} parent=39 // pred_fallthru
          _
        // Predicated region
        $region49: #{tpavi_forward.1} parent=39 // pred_check
          %p321 = pneg %p104
        $region50: #{tpavi_forward.1} parent=39 // pred_check_branch
          %323 = sbr.rel (%p321) target = $region52
        $region51: #{tpavi_forward.1} parent=39 // pred_region
          %p324 = scmp.lt.s32.totalorder %s25, 1
          %s325 = scalar_select %p324, %s25, 1
          %s326 = smul.addr %s325, 2
          %s327 = scalar_lea.vmem %s2, %s326
        $region52: #{tpavi_forward.1} parent=39 // pred_fallthru
          _
      $region40: #{tpavi_forward.1} parent=5 // pred_fallthru
        _
      %p328 = scmp.le.s32.totalorder 1, %s18
      %p329 = scmp.lt.s32.totalorder %s18, 5
      %p330 = pnand %p328, %p329
      %p331 = pneg %p330
      // Predicated region
      $region53: #{tpavi_forward.1} parent=5 // pred_check
        _
      $region54: #{tpavi_forward.1} parent=5 // pred_check_branch
        %333 = sbr.rel (%p330) target = $region56
      $region55: #{tpavi_forward.1} parent=5 // pred_region
        %s334 = ssub.s32 %s18, 1
        %s335 = smul.u32 16, %s28
        %p336 = scmp.lt.s32.totalorder %s27, 1
        %s337 = scalar_select %p336, %s27, 1
        %p338 = scmp.lt.s32.totalorder %s335, 31
        %s339 = scalar_select %p338, %s335, 31
        %s340 = smul.addr %s337, 32
        %s341 = sadd.s32 %s339, %s340
        %s342 = smul.addr %s341, 8
        %s343 = scalar_lea.vmem %s0, %s342
        %p344 = pneg %p58
        %p345 = pneg %p55
        %p346 = scmp.lt.s32.totalorder %s27, 1
        %s347 = scalar_select %p346, %s27, 1
        %s348 = smul.addr %s347, 2
        %s349 = scalar_lea.vmem %s1, %s348
        %p350 = pneg %p84
        %p351 = pneg %p81
        %p352 = scmp.lt.s32.totalorder %s27, 1
        %s353 = scalar_select %p352, %s27, 1
        %s354 = smul.addr %s353, 2
        %s355 = scalar_lea.vmem %s2, %s354
        %p356 = pneg %p110
        %p357 = pneg %p107
        %p358 = pneg %p131
        %p359 = pneg %p128
        %p360 = pneg %p152
        %p361 = pneg %p149
        %p362 = pneg %p173
        %p363 = pneg %p170
        %p364 = pneg %p194
        %p365 = pneg %p191
        %p366 = pneg %p215
        %p367 = pneg %p212
        %p368 = pneg %p236
        %p369 = pneg %p233
        %p370 = pneg %p264
        %p371 = pneg %p261
        %s372 = sand.u32 %s251, 1
        %s373 = scalar_lea.sflag [#allocation3], %s372
        %s374 = sand.u32 %s251, 1
        %s375 = smul.addr %s374, 128
        %s376 = scalar_lea.vmem [#allocation2], %s375
        %s377 = smul.u32 16, %s28
        %p378 = scmp.lt.s32.totalorder %s27, 1
        %s379 = scalar_select %p378, %s27, 1
        %p380 = scmp.lt.s32.totalorder %s377, 31
        %s381 = scalar_select %p380, %s377, 31
        %s382 = smul.addr %s379, 32
        %s383 = sadd.s32 %s381, %s382
        %s384 = smul.addr %s383, 8
        %s385 = scalar_lea.vmem %s0, %s384
        %s386 = smul.u32 16, %s28
        %p387 = scmp.lt.s32.totalorder %s27, 1
        %s388 = scalar_select %p387, %s27, 1
        %s389 = smul.addr %s388, 2
        %s390 = scalar_lea.vmem %s1, %s389
        %p391 = scmp.lt.s32.totalorder %s27, 1
        %s392 = scalar_select %p391, %s27, 1
        %s393 = smul.addr %s392, 2
        %s394 = scalar_lea.vmem %s2, %s393
        %s395 = smul.u32 16, %s28
        %v397 = vld [vmem:[%s385] sm:$0xff]
        %v398 = vld [vmem:[%s385 + $0x8] sm:$0xff]
        %v399 = vld [vmem:[%s385 + $0x10] sm:$0xff]
        %v400 = vld [vmem:[%s385 + $0x18] sm:$0xff]
        %v401 = vld [vmem:[%s385 + $0x20] sm:$0xff]
        %v402 = vld [vmem:[%s385 + $0x28] sm:$0xff]
        %v403 = vld [vmem:[%s385 + $0x30] sm:$0xff]
        %v404 = vld [vmem:[%s385 + $0x38] sm:$0xff]
        %v405 = vld [vmem:[%s385 + $0x40] sm:$0xff]
        %v406 = vld [vmem:[%s385 + $0x48] sm:$0xff]
        %v407 = vld [vmem:[%s385 + $0x50] sm:$0xff]
        %v408 = vld [vmem:[%s385 + $0x58] sm:$0xff]
        %v409 = vld [vmem:[%s385 + $0x60] sm:$0xff]
        %v410 = vld [vmem:[%s385 + $0x68] sm:$0xff]
        %v411 = vld [vmem:[%s385 + $0x70] sm:$0xff]
        %v412 = vld [vmem:[%s385 + $0x78] sm:$0xff]
        %v413 = vpack.c.bf16 %v398, %v397
        %v414 = vpack.c.bf16 %v400, %v399
        %v415 = vpack.c.bf16 %v402, %v401
        %v416 = vpack.c.bf16 %v404, %v403
        %v417 = vpack.c.bf16 %v406, %v405
        %v418 = vpack.c.bf16 %v408, %v407
        %v419 = vpack.c.bf16 %v410, %v409
        %v420 = vpack.c.bf16 %v412, %v411
        %v421 = vld [vmem:[%s3] sm:$0xf]
        %v422 = vld [vmem:[%s3 + $0x4] sm:$0xf]
        %v423 = vld [vmem:[%s3 + $0x8] sm:$0xf]
        %v424 = vld [vmem:[%s3 + $0xc] sm:$0xf]
        %v425 = vld [vmem:[%s3 + $0x10] sm:$0xf]
        %v426 = vld [vmem:[%s3 + $0x14] sm:$0xf]
        %v427 = vld [vmem:[%s3 + $0x18] sm:$0xf]
        %v428 = vld [vmem:[%s3 + $0x1c] sm:$0xf]
        %v429 = vld [vmem:[%s3 + $0x20] sm:$0xf]
        %v430 = vld [vmem:[%s3 + $0x24] sm:$0xf]
        %v431 = vld [vmem:[%s3 + $0x28] sm:$0xf]
        %v432 = vld [vmem:[%s3 + $0x2c] sm:$0xf]
        %v433 = vld [vmem:[%s3 + $0x30] sm:$0xf]
        %v434 = vld [vmem:[%s3 + $0x34] sm:$0xf]
        %v435 = vld [vmem:[%s3 + $0x38] sm:$0xf]
        %v436 = vld [vmem:[%s3 + $0x3c] sm:$0xf]
        %v437 = vld [vmem:[%s4] sm:$0x1]
        %v439 = vlaneseq
        %v440 = vshrl.u32 %v439, 7
        %v441 = vsub.s32 0, %v440
        %v442 = vrot.slane %v437, %v441
        %v460 = vunpack.c.l.b16 %v421
        %v461 = vunpack.c.l.b16 %v422
        %v462 = vunpack.c.l.b16 %v423
        %v463 = vunpack.c.l.b16 %v424
        %v464 = vunpack.c.l.b16 %v425
        %v465 = vunpack.c.l.b16 %v426
        %v466 = vunpack.c.l.b16 %v427
        %v467 = vunpack.c.l.b16 %v428
        %v468 = vunpack.c.l.b16 %v429
        %v469 = vunpack.c.l.b16 %v430
        %v470 = vunpack.c.l.b16 %v431
        %v471 = vunpack.c.l.b16 %v432
        %v472 = vunpack.c.l.b16 %v433
        %v473 = vunpack.c.l.b16 %v434
        %v474 = vunpack.c.l.b16 %v435
        %v475 = vunpack.c.l.b16 %v436
        %v476 = vpack.c.b16 %v461, %v460
        %v477 = vpack.c.b16 %v463, %v462
        %v478 = vpack.c.b16 %v465, %v464
        %v479 = vpack.c.b16 %v467, %v466
        %v480 = vpack.c.b16 %v469, %v468
        %v481 = vpack.c.b16 %v471, %v470
        %v482 = vpack.c.b16 %v473, %v472
        %v483 = vpack.c.b16 %v475, %v474
        %492 = vmatprep.subr.bf16.mxu0 0
        %493 = vmatpush1.bf16.msra.mxu0 %v476
        %494 = vmatprep.subr.bf16.mxu0 0
        %495 = vmatpush1.bf16.msra.mxu0 %v477
        %496 = vmatprep.subr.bf16.mxu0 0
        %497 = vmatpush1.bf16.msra.mxu0 %v478
        %498 = vmatprep.subr.bf16.mxu0 0
        %499 = vmatpush1.bf16.msra.mxu0 %v479
        %500 = vmatprep.subr.bf16.mxu0 0
        %501 = vmatpush1.bf16.msra.mxu0 %v480
        %502 = vmatprep.subr.bf16.mxu0 0
        %503 = vmatpush1.bf16.msra.mxu0 %v481
        %504 = vmatprep.subr.bf16.mxu0 0
        %505 = vmatpush1.bf16.msra.mxu0 %v482
        %506 = vmatprep.subr.bf16.mxu0 0
        %507 = vmatpush1.bf16.msra.mxu0 %v483
        %508 = vmatprep.subr.bf16.mxu0 0
        %509 = vmatpush1.bf16.msra.mxu0 0
        %510 = vmatprep.subr.bf16.mxu0 0
        %511 = vmatpush1.bf16.msra.mxu0 0
        %512 = vmatprep.subr.bf16.mxu0 0
        %513 = vmatpush1.bf16.msra.mxu0 0
        %514 = vmatprep.subr.bf16.mxu0 0
        %515 = vmatpush1.bf16.msra.mxu0 0
        %516 = vmatprep.subr.bf16.mxu0 0
        %517 = vmatpush1.bf16.msra.mxu0 0
        %518 = vmatprep.subr.bf16.mxu0 0
        %519 = vmatpush1.bf16.msra.mxu0 0
        %520 = vmatprep.subr.bf16.mxu0 0
        %521 = vmatpush1.bf16.msra.mxu0 0
        %522 = vmatprep.subr.bf16.mxu0 0
        %523 = vmatpush1.bf16.msra.mxu0 0
        %524 = vmatprep.mubr.bf16.mxu0 0
        %525 = vmatmul.mubr.bf16.gmra.mrb[0].mxu0 %v413
        %v526 = vpop.f32.mrb[0].mxu0
        %v527 = vadd.f32 %v442, %v526
        %v528 = vpop.f32.mrb[0].mxu0
        %v529 = vpop.f32.mrb[0].mxu0
        %v530 = vadd.f32 %v442, %v529
        %v531 = vpop.f32.mrb[0].mxu0
        %532 = vmatprep.mubr.bf16.mxu0 0
        %533 = vmatmul.mubr.bf16.gmra.mrb[0].mxu0 %v414
        %v534 = vpop.f32.mrb[0].mxu0
        %v535 = vadd.f32 %v442, %v534
        %v536 = vpop.f32.mrb[0].mxu0
        %v537 = vpop.f32.mrb[0].mxu0
        %v538 = vadd.f32 %v442, %v537
        %v539 = vpop.f32.mrb[0].mxu0
        %540 = vmatprep.mubr.bf16.mxu0 0
        %541 = vmatmul.mubr.bf16.gmra.mrb[0].mxu0 %v415
        %v542 = vpop.f32.mrb[0].mxu0
        %v543 = vadd.f32 %v442, %v542
        %v544 = vpop.f32.mrb[0].mxu0
        %v545 = vpop.f32.mrb[0].mxu0
        %v546 = vadd.f32 %v442, %v545
        %v547 = vpop.f32.mrb[0].mxu0
        %548 = vmatprep.mubr.bf16.mxu0 0
        %549 = vmatmul.mubr.bf16.gmra.mrb[0].mxu0 %v416
        %v550 = vpop.f32.mrb[0].mxu0
        %v551 = vadd.f32 %v442, %v550
        %v552 = vpop.f32.mrb[0].mxu0
        %v553 = vpop.f32.mrb[0].mxu0
        %v554 = vadd.f32 %v442, %v553
        %v555 = vpop.f32.mrb[0].mxu0
        %556 = vmatprep.mubr.bf16.mxu0 0
        %557 = vmatmul.mubr.bf16.gmra.mrb[0].mxu0 %v417
        %v558 = vpop.f32.mrb[0].mxu0
        %v559 = vadd.f32 %v442, %v558
        %v560 = vpop.f32.mrb[0].mxu0
        %v561 = vpop.f32.mrb[0].mxu0
        %v562 = vadd.f32 %v442, %v561
        %v563 = vpop.f32.mrb[0].mxu0
        %564 = vmatprep.mubr.bf16.mxu0 0
        %565 = vmatmul.mubr.bf16.gmra.mrb[0].mxu0 %v418
        %v566 = vpop.f32.mrb[0].mxu0
        %v567 = vadd.f32 %v442, %v566
        %v568 = vpop.f32.mrb[0].mxu0
        %v569 = vpop.f32.mrb[0].mxu0
        %v570 = vadd.f32 %v442, %v569
        %v571 = vpop.f32.mrb[0].mxu0
        %572 = vmatprep.mubr.bf16.mxu0 0
        %573 = vmatmul.mubr.bf16.gmra.mrb[0].mxu0 %v419
        %v574 = vpop.f32.mrb[0].mxu0
        %v575 = vadd.f32 %v442, %v574
        %v576 = vpop.f32.mrb[0].mxu0
        %v577 = vpop.f32.mrb[0].mxu0
        %v578 = vadd.f32 %v442, %v577
        %v579 = vpop.f32.mrb[0].mxu0
        %580 = vmatprep.mubr.bf16.mxu0 0
        %581 = vmatmul.mubr.bf16.gmra.mrb[0].mxu0 %v420
        %v582 = vpop.f32.mrb[0].mxu0
        %v583 = vadd.f32 %v442, %v582
        %v584 = vpop.f32.mrb[0].mxu0
        %v585 = vpop.f32.mrb[0].mxu0
        %v586 = vadd.f32 %v442, %v585
        %v587 = vpop.f32.mrb[0].mxu0
        %588 = vdwg.mxu0
        %v589 = vpack.c.bf16 %v530, %v527
        %v590 = vpack.c.bf16 %v538, %v535
        %v591 = vpack.c.bf16 %v546, %v543
        %v592 = vpack.c.bf16 %v554, %v551
        %v593 = vpack.c.bf16 %v562, %v559
        %v594 = vpack.c.bf16 %v570, %v567
        %v595 = vpack.c.bf16 %v578, %v575
        %v596 = vpack.c.bf16 %v586, %v583
        %v597 = vld [vmem:[%s390] sm:$0x3]
        %vm598 = vcmask 523264
        %v600 = vsel %vm598, %v589, 0
        %v603 = vsel %vm598, %v590, 0
        %v606 = vsel %vm598, %v591, 0
        %v609 = vsel %vm598, %v592, 0
        %v612 = vsel %vm598, %v593, 0
        %v615 = vsel %vm598, %v594, 0
        %v618 = vsel %vm598, %v595, 0
        %v621 = vsel %vm598, %v596, 0
        %v624 = vsel %vm598, %v597, 0
        %626 = vmatprep.subr.bf16.mxu0 0
        %627 = vmatpush1.bf16.xpose.msra.mxu0 %v624
        %628 = vmatprep.subr.bf16.mxu0 0
        %629 = vmatpush1.bf16.xpose.msra.mxu0 0
        %630 = vmatprep.subr.bf16.mxu0 0
        %631 = vmatpush1.bf16.xpose.msra.mxu0 0
        %632 = vmatprep.subr.bf16.mxu0 0
        %633 = vmatpush1.bf16.xpose.msra.mxu0 0
        %634 = vmatprep.subr.bf16.mxu0 0
        %635 = vmatpush1.bf16.xpose.msra.mxu0 0
        %636 = vmatprep.subr.bf16.mxu0 0
        %637 = vmatpush1.bf16.xpose.msra.mxu0 0
        %638 = vmatprep.subr.bf16.mxu0 0
        %639 = vmatpush1.bf16.xpose.msra.mxu0 0
        %640 = vmatprep.subr.bf16.mxu0 0
        %641 = vmatpush1.bf16.xpose.msra.mxu0 0
        %642 = vmatprep.subr.bf16.mxu0 0
        %643 = vmatpush1.bf16.xpose.msra.mxu0 0
        %644 = vmatprep.subr.bf16.mxu0 0
        %645 = vmatpush1.bf16.xpose.msra.mxu0 0
        %646 = vmatprep.subr.bf16.mxu0 0
        %647 = vmatpush1.bf16.xpose.msra.mxu0 0
        %648 = vmatprep.subr.bf16.mxu0 0
        %649 = vmatpush1.bf16.xpose.msra.mxu0 0
        %650 = vmatprep.subr.bf16.mxu0 0
        %651 = vmatpush1.bf16.xpose.msra.mxu0 0
        %652 = vmatprep.subr.bf16.mxu0 0
        %653 = vmatpush1.bf16.xpose.msra.mxu0 0
        %654 = vmatprep.subr.bf16.mxu0 0
        %655 = vmatpush1.bf16.xpose.msra.mxu0 0
        %656 = vmatprep.subr.bf16.mxu0 0
        %657 = vmatpush1.bf16.xpose.msra.mxu0 0
        %658 = vmatprep.mubr.bf16.mxu0 0
        %659 = vmatmul.mubr.bf16.gmra.mrb[0].mxu0 %v600
        %v660 = vpop.f32.mrb[0].mxu0
        %v661 = vadd.f32 0.0, %v660
        %v662 = vpop.f32.mrb[0].mxu0
        %v663 = vpop.f32.mrb[0].mxu0
        %v664 = vadd.f32 0.0, %v663
        %v665 = vpop.f32.mrb[0].mxu0
        %666 = vmatprep.mubr.bf16.mxu0 0
        %667 = vmatmul.mubr.bf16.gmra.mrb[0].mxu0 %v603
        %v668 = vpop.f32.mrb[0].mxu0
        %v669 = vadd.f32 0.0, %v668
        %v670 = vpop.f32.mrb[0].mxu0
        %v671 = vpop.f32.mrb[0].mxu0
        %v672 = vadd.f32 0.0, %v671
        %v673 = vpop.f32.mrb[0].mxu0
        %674 = vmatprep.mubr.bf16.mxu0 0
        %675 = vmatmul.mubr.bf16.gmra.mrb[0].mxu0 %v606
        %v676 = vpop.f32.mrb[0].mxu0
        %v677 = vadd.f32 0.0, %v676
        %v678 = vpop.f32.mrb[0].mxu0
        %v679 = vpop.f32.mrb[0].mxu0
        %v680 = vadd.f32 0.0, %v679
        %v681 = vpop.f32.mrb[0].mxu0
        %682 = vmatprep.mubr.bf16.mxu0 0
        %683 = vmatmul.mubr.bf16.gmra.mrb[0].mxu0 %v609
        %v684 = vpop.f32.mrb[0].mxu0
        %v685 = vadd.f32 0.0, %v684
        %v686 = vpop.f32.mrb[0].mxu0
        %v687 = vpop.f32.mrb[0].mxu0
        %v688 = vadd.f32 0.0, %v687
        %v689 = vpop.f32.mrb[0].mxu0
        %690 = vmatprep.mubr.bf16.mxu0 0
        %691 = vmatmul.mubr.bf16.gmra.mrb[0].mxu0 %v612
        %v692 = vpop.f32.mrb[0].mxu0
        %v693 = vadd.f32 0.0, %v692
        %v694 = vpop.f32.mrb[0].mxu0
        %v695 = vpop.f32.mrb[0].mxu0
        %v696 = vadd.f32 0.0, %v695
        %v697 = vpop.f32.mrb[0].mxu0
        %698 = vmatprep.mubr.bf16.mxu0 0
        %699 = vmatmul.mubr.bf16.gmra.mrb[0].mxu0 %v615
        %v700 = vpop.f32.mrb[0].mxu0
        %v701 = vadd.f32 0.0, %v700
        %v702 = vpop.f32.mrb[0].mxu0
        %v703 = vpop.f32.mrb[0].mxu0
        %v704 = vadd.f32 0.0, %v703
        %v705 = vpop.f32.mrb[0].mxu0
        %706 = vmatprep.mubr.bf16.mxu0 0
        %707 = vmatmul.mubr.bf16.gmra.mrb[0].mxu0 %v618
        %v708 = vpop.f32.mrb[0].mxu0
        %v709 = vadd.f32 0.0, %v708
        %v710 = vpop.f32.mrb[0].mxu0
        %v711 = vpop.f32.mrb[0].mxu0
        %v712 = vadd.f32 0.0, %v711
        %v713 = vpop.f32.mrb[0].mxu0
        %714 = vmatprep.mubr.bf16.mxu0 0
        %715 = vmatmul.mubr.bf16.gmra.mrb[0].mxu0 %v621
        %v716 = vpop.f32.mrb[0].mxu0
        %v717 = vadd.f32 0.0, %v716
        %v718 = vpop.f32.mrb[0].mxu0
        %v719 = vpop.f32.mrb[0].mxu0
        %v720 = vadd.f32 0.0, %v719
        %v721 = vpop.f32.mrb[0].mxu0
        %722 = vdwg.mxu0
        %v723 = vpack.c.bf16 %v664, %v661
        %v724 = vpack.c.bf16 %v672, %v669
        %v725 = vpack.c.bf16 %v680, %v677
        %v726 = vpack.c.bf16 %v688, %v685
        %v727 = vpack.c.bf16 %v696, %v693
        %v728 = vpack.c.bf16 %v704, %v701
        %v729 = vpack.c.bf16 %v712, %v709
        %v730 = vpack.c.bf16 %v720, %v717
        %v731 = vld [vmem:[%s394] sm:$0x3]
        %vm732 = vcmask 31744
        %v734 = vsel %vm732, %v723, 0
        %v737 = vsel %vm732, %v724, 0
        %v740 = vsel %vm732, %v725, 0
        %v743 = vsel %vm732, %v726, 0
        %v746 = vsel %vm732, %v727, 0
        %v749 = vsel %vm732, %v728, 0
        %v752 = vsel %vm732, %v729, 0
        %v755 = vsel %vm732, %v730, 0
        %vm757 = vcmask 1041408
        %v759 = vsel %vm757, %v731, 0
        %761 = vmatprep.subr.bf16.mxu0 0
        %762 = vmatpush1.bf16.msra.mxu0 %v759
        %763 = vmatprep.subr.bf16.mxu0 0
        %764 = vmatpush1.bf16.msra.mxu0 0
        %765 = vmatprep.subr.bf16.mxu0 0
        %766 = vmatpush1.bf16.msra.mxu0 0
        %767 = vmatprep.subr.bf16.mxu0 0
        %768 = vmatpush1.bf16.msra.mxu0 0
        %769 = vmatprep.subr.bf16.mxu0 0
        %770 = vmatpush1.bf16.msra.mxu0 0
        %771 = vmatprep.subr.bf16.mxu0 0
        %772 = vmatpush1.bf16.msra.mxu0 0
        %773 = vmatprep.subr.bf16.mxu0 0
        %774 = vmatpush1.bf16.msra.mxu0 0
        %775 = vmatprep.subr.bf16.mxu0 0
        %776 = vmatpush1.bf16.msra.mxu0 0
        %777 = vmatprep.subr.bf16.mxu0 0
        %778 = vmatpush1.bf16.msra.mxu0 0
        %779 = vmatprep.subr.bf16.mxu0 0
        %780 = vmatpush1.bf16.msra.mxu0 0
        %781 = vmatprep.subr.bf16.mxu0 0
        %782 = vmatpush1.bf16.msra.mxu0 0
        %783 = vmatprep.subr.bf16.mxu0 0
        %784 = vmatpush1.bf16.msra.mxu0 0
        %785 = vmatprep.subr.bf16.mxu0 0
        %786 = vmatpush1.bf16.msra.mxu0 0
        %787 = vmatprep.subr.bf16.mxu0 0
        %788 = vmatpush1.bf16.msra.mxu0 0
        %789 = vmatprep.subr.bf16.mxu0 0
        %790 = vmatpush1.bf16.msra.mxu0 0
        %791 = vmatprep.subr.bf16.mxu0 0
        %792 = vmatpush1.bf16.msra.mxu0 0
        %793 = vmatprep.mubr.bf16.mxu0 0
        %794 = vmatmul.mubr.bf16.gmra.mrb[0].mxu0 %v734
        %v795 = vpop.f32.mrb[0].mxu0
        %v796 = vadd.f32 0.0, %v795
        %v797 = vpop.f32.mrb[0].mxu0
        %v798 = vpop.f32.mrb[0].mxu0
        %v799 = vadd.f32 0.0, %v798
        %v800 = vpop.f32.mrb[0].mxu0
        %801 = vmatprep.mubr.bf16.mxu0 0
        %802 = vmatmul.mubr.bf16.gmra.mrb[0].mxu0 %v737
        %v803 = vpop.f32.mrb[0].mxu0
        %v804 = vadd.f32 0.0, %v803
        %v805 = vpop.f32.mrb[0].mxu0
        %v806 = vpop.f32.mrb[0].mxu0
        %v807 = vadd.f32 0.0, %v806
        %v808 = vpop.f32.mrb[0].mxu0
        %809 = vmatprep.mubr.bf16.mxu0 0
        %810 = vmatmul.mubr.bf16.gmra.mrb[0].mxu0 %v740
        %v811 = vpop.f32.mrb[0].mxu0
        %v812 = vadd.f32 0.0, %v811
        %v813 = vpop.f32.mrb[0].mxu0
        %v814 = vpop.f32.mrb[0].mxu0
        %v815 = vadd.f32 0.0, %v814
        %v816 = vpop.f32.mrb[0].mxu0
        %817 = vmatprep.mubr.bf16.mxu0 0
        %818 = vmatmul.mubr.bf16.gmra.mrb[0].mxu0 %v743
        %v819 = vpop.f32.mrb[0].mxu0
        %v820 = vadd.f32 0.0, %v819
        %v821 = vpop.f32.mrb[0].mxu0
        %v822 = vpop.f32.mrb[0].mxu0
        %v823 = vadd.f32 0.0, %v822
        %v824 = vpop.f32.mrb[0].mxu0
        %825 = vmatprep.mubr.bf16.mxu0 0
        %826 = vmatmul.mubr.bf16.gmra.mrb[0].mxu0 %v746
        %v827 = vpop.f32.mrb[0].mxu0
        %v828 = vadd.f32 0.0, %v827
        %v829 = vpop.f32.mrb[0].mxu0
        %v830 = vpop.f32.mrb[0].mxu0
        %v831 = vadd.f32 0.0, %v830
        %v832 = vpop.f32.mrb[0].mxu0
        %833 = vmatprep.mubr.bf16.mxu0 0
        %834 = vmatmul.mubr.bf16.gmra.mrb[0].mxu0 %v749
        %v835 = vpop.f32.mrb[0].mxu0
        %v836 = vadd.f32 0.0, %v835
        %v837 = vpop.f32.mrb[0].mxu0
        %v838 = vpop.f32.mrb[0].mxu0
        %v839 = vadd.f32 0.0, %v838
        %v840 = vpop.f32.mrb[0].mxu0
        %841 = vmatprep.mubr.bf16.mxu0 0
        %842 = vmatmul.mubr.bf16.gmra.mrb[0].mxu0 %v752
        %v843 = vpop.f32.mrb[0].mxu0
        %v844 = vadd.f32 0.0, %v843
        %v845 = vpop.f32.mrb[0].mxu0
        %v846 = vpop.f32.mrb[0].mxu0
        %v847 = vadd.f32 0.0, %v846
        %v848 = vpop.f32.mrb[0].mxu0
        %849 = vmatprep.mubr.bf16.mxu0 0
        %850 = vmatmul.mubr.bf16.gmra.mrb[0].mxu0 %v755
        %v851 = vpop.f32.mrb[0].mxu0
        %v852 = vadd.f32 0.0, %v851
        %v853 = vpop.f32.mrb[0].mxu0
        %v854 = vpop.f32.mrb[0].mxu0
        %v855 = vadd.f32 0.0, %v854
        %v856 = vpop.f32.mrb[0].mxu0
        %857 = vdwg.mxu0
        %v858 = vpack.c.bf16 %v799, %v796
        %v859 = vpack.c.bf16 %v807, %v804
        %v860 = vpack.c.bf16 %v815, %v812
        %v861 = vpack.c.bf16 %v823, %v820
        %v862 = vpack.c.bf16 %v831, %v828
        %v863 = vpack.c.bf16 %v839, %v836
        %v864 = vpack.c.bf16 %v847, %v844
        %v865 = vpack.c.bf16 %v855, %v852
        %v866 = vld [vmem:[%s5] sm:$0xf]
        %v867 = vld [vmem:[%s5 + $0x4] sm:$0xf]
        %v868 = vld [vmem:[%s5 + $0x8] sm:$0xf]
        %v869 = vld [vmem:[%s5 + $0xc] sm:$0xf]
        %v870 = vld [vmem:[%s5 + $0x10] sm:$0xf]
        %v871 = vld [vmem:[%s5 + $0x14] sm:$0xf]
        %v872 = vld [vmem:[%s5 + $0x18] sm:$0xf]
        %v873 = vld [vmem:[%s5 + $0x1c] sm:$0xf]
        %v874 = vld [vmem:[%s6] sm:$0x1]
        %v876 = vlaneseq
        %v877 = vshrl.u32 %v876, 7
        %v878 = vsub.s32 0, %v877
        %v879 = vrot.slane %v874, %v878
        %v889 = vunpack.c.l.b16 %v866
        %v890 = vunpack.c.l.b16 %v867
        %v891 = vunpack.c.l.b16 %v868
        %v892 = vunpack.c.l.b16 %v869
        %v893 = vunpack.c.l.b16 %v870
        %v894 = vunpack.c.l.b16 %v871
        %v895 = vunpack.c.l.b16 %v872
        %v896 = vunpack.c.l.b16 %v873
        %v897 = vpack.c.b16 %v890, %v889
        %v898 = vpack.c.b16 %v892, %v891
        %v899 = vpack.c.b16 %v894, %v893
        %v900 = vpack.c.b16 %v896, %v895
        %v906 = vsel %vm598, %v858, 0
        %v909 = vsel %vm598, %v859, 0
        %v912 = vsel %vm598, %v860, 0
        %v915 = vsel %vm598, %v861, 0
        %v918 = vsel %vm598, %v862, 0
        %v921 = vsel %vm598, %v863, 0
        %v924 = vsel %vm598, %v864, 0
        %v927 = vsel %vm598, %v865, 0
        %929 = vmatprep.subr.bf16.mxu0 0
        %930 = vmatpush1.bf16.msra.mxu0 %v897
        %931 = vmatprep.subr.bf16.mxu0 0
        %932 = vmatpush1.bf16.msra.mxu0 %v898
        %933 = vmatprep.subr.bf16.mxu0 0
        %934 = vmatpush1.bf16.msra.mxu0 %v899
        %935 = vmatprep.subr.bf16.mxu0 0
        %936 = vmatpush1.bf16.msra.mxu0 %v900
        %937 = vmatprep.subr.bf16.mxu0 0
        %938 = vmatpush1.bf16.msra.mxu0 0
        %939 = vmatprep.subr.bf16.mxu0 0
        %940 = vmatpush1.bf16.msra.mxu0 0
        %941 = vmatprep.subr.bf16.mxu0 0
        %942 = vmatpush1.bf16.msra.mxu0 0
        %943 = vmatprep.subr.bf16.mxu0 0
        %944 = vmatpush1.bf16.msra.mxu0 0
        %945 = vmatprep.subr.bf16.mxu0 0
        %946 = vmatpush1.bf16.msra.mxu0 0
        %947 = vmatprep.subr.bf16.mxu0 0
        %948 = vmatpush1.bf16.msra.mxu0 0
        %949 = vmatprep.subr.bf16.mxu0 0
        %950 = vmatpush1.bf16.msra.mxu0 0
        %951 = vmatprep.subr.bf16.mxu0 0
        %952 = vmatpush1.bf16.msra.mxu0 0
        %953 = vmatprep.subr.bf16.mxu0 0
        %954 = vmatpush1.bf16.msra.mxu0 0
        %955 = vmatprep.subr.bf16.mxu0 0
        %956 = vmatpush1.bf16.msra.mxu0 0
        %957 = vmatprep.subr.bf16.mxu0 0
        %958 = vmatpush1.bf16.msra.mxu0 0
        %959 = vmatprep.subr.bf16.mxu0 0
        %960 = vmatpush1.bf16.msra.mxu0 0
        %961 = vmatprep.mubr.bf16.mxu0 0
        %962 = vmatmul.mubr.bf16.gmra.mrb[0].mxu0 %v906
        %v963 = vpop.f32.mrb[0].mxu0
        %v964 = vadd.f32 %v879, %v963
        %v965 = vpop.f32.mrb[0].mxu0
        %v966 = vpop.f32.mrb[0].mxu0
        %v967 = vadd.f32 %v879, %v966
        %v968 = vpop.f32.mrb[0].mxu0
        %969 = vmatprep.mubr.bf16.mxu0 0
        %970 = vmatmul.mubr.bf16.gmra.mrb[0].mxu0 %v909
        %v971 = vpop.f32.mrb[0].mxu0
        %v972 = vadd.f32 %v879, %v971
        %v973 = vpop.f32.mrb[0].mxu0
        %v974 = vpop.f32.mrb[0].mxu0
        %v975 = vadd.f32 %v879, %v974
        %v976 = vpop.f32.mrb[0].mxu0
        %977 = vmatprep.mubr.bf16.mxu0 0
        %978 = vmatmul.mubr.bf16.gmra.mrb[0].mxu0 %v912
        %v979 = vpop.f32.mrb[0].mxu0
        %v980 = vadd.f32 %v879, %v979
        %v981 = vpop.f32.mrb[0].mxu0
        %v982 = vpop.f32.mrb[0].mxu0
        %v983 = vadd.f32 %v879, %v982
        %v984 = vpop.f32.mrb[0].mxu0
        %985 = vmatprep.mubr.bf16.mxu0 0
        %986 = vmatmul.mubr.bf16.gmra.mrb[0].mxu0 %v915
        %v987 = vpop.f32.mrb[0].mxu0
        %v988 = vadd.f32 %v879, %v987
        %v989 = vpop.f32.mrb[0].mxu0
        %v990 = vpop.f32.mrb[0].mxu0
        %v991 = vadd.f32 %v879, %v990
        %v992 = vpop.f32.mrb[0].mxu0
        %993 = vmatprep.mubr.bf16.mxu0 0
        %994 = vmatmul.mubr.bf16.gmra.mrb[0].mxu0 %v918
        %v995 = vpop.f32.mrb[0].mxu0
        %v996 = vadd.f32 %v879, %v995
        %v997 = vpop.f32.mrb[0].mxu0
        %v998 = vpop.f32.mrb[0].mxu0
        %v999 = vadd.f32 %v879, %v998
        %v1000 = vpop.f32.mrb[0].mxu0
        %1001 = vmatprep.mubr.bf16.mxu0 0
        %1002 = vmatmul.mubr.bf16.gmra.mrb[0].mxu0 %v921
        %v1003 = vpop.f32.mrb[0].mxu0
        %v1004 = vadd.f32 %v879, %v1003
        %v1005 = vpop.f32.mrb[0].mxu0
        %v1006 = vpop.f32.mrb[0].mxu0
        %v1007 = vadd.f32 %v879, %v1006
        %v1008 = vpop.f32.mrb[0].mxu0
        %1009 = vmatprep.mubr.bf16.mxu0 0
        %1010 = vmatmul.mubr.bf16.gmra.mrb[0].mxu0 %v924
        %v1011 = vpop.f32.mrb[0].mxu0
        %v1012 = vadd.f32 %v879, %v1011
        %v1013 = vpop.f32.mrb[0].mxu0
        %v1014 = vpop.f32.mrb[0].mxu0
        %v1015 = vadd.f32 %v879, %v1014
        %v1016 = vpop.f32.mrb[0].mxu0
        %1017 = vmatprep.mubr.bf16.mxu0 0
        %1018 = vmatmul.mubr.bf16.gmra.mrb[0].mxu0 %v927
        %v1019 = vpop.f32.mrb[0].mxu0
        %v1020 = vadd.f32 %v879, %v1019
        %v1021 = vpop.f32.mrb[0].mxu0
        %v1022 = vpop.f32.mrb[0].mxu0
        %v1023 = vadd.f32 %v879, %v1022
        %v1024 = vpop.f32.mrb[0].mxu0
        %1025 = vdwg.mxu0
        %v1026 = vadd.f32 %v964, %v397
        %v1027 = vadd.f32 %v967, %v398
        %v1028 = vadd.f32 %v972, %v399
        %v1029 = vadd.f32 %v975, %v400
        %v1030 = vadd.f32 %v980, %v401
        %v1031 = vadd.f32 %v983, %v402
        %v1032 = vadd.f32 %v988, %v403
        %v1033 = vadd.f32 %v991, %v404
        %v1034 = vadd.f32 %v996, %v405
        %v1035 = vadd.f32 %v999, %v406
        %v1036 = vadd.f32 %v1004, %v407
        %v1037 = vadd.f32 %v1007, %v408
        %v1038 = vadd.f32 %v1012, %v409
        %v1039 = vadd.f32 %v1015, %v410
        %v1040 = vadd.f32 %v1020, %v411
        %v1041 = vadd.f32 %v1023, %v412
        %1042 = vadd.xlane.f32.xlu0 %v1026
        %v1043 = vpop.xlane.xlu0 %1042
        %1044 = vadd.xlane.f32.xlu0 %v1027
        %v1045 = vpop.xlane.xlu0 %1044
        %1046 = vadd.xlane.f32.xlu0 %v1028
        %v1047 = vpop.xlane.xlu0 %1046
        %1048 = vadd.xlane.f32.xlu0 %v1029
        %v1049 = vpop.xlane.xlu0 %1048
        %1050 = vadd.xlane.f32.xlu0 %v1030
        %v1051 = vpop.xlane.xlu0 %1050
        %1052 = vadd.xlane.f32.xlu0 %v1031
        %v1053 = vpop.xlane.xlu0 %1052
        %1054 = vadd.xlane.f32.xlu0 %v1032
        %v1055 = vpop.xlane.xlu0 %1054
        %1056 = vadd.xlane.f32.xlu0 %v1033
        %v1057 = vpop.xlane.xlu0 %1056
        %1058 = vadd.xlane.f32.xlu0 %v1034
        %v1059 = vpop.xlane.xlu0 %1058
        %1060 = vadd.xlane.f32.xlu0 %v1035
        %v1061 = vpop.xlane.xlu0 %1060
        %1062 = vadd.xlane.f32.xlu0 %v1036
        %v1063 = vpop.xlane.xlu0 %1062
        %1064 = vadd.xlane.f32.xlu0 %v1037
        %v1065 = vpop.xlane.xlu0 %1064
        %1066 = vadd.xlane.f32.xlu0 %v1038
        %v1067 = vpop.xlane.xlu0 %1066
        %1068 = vadd.xlane.f32.xlu0 %v1039
        %v1069 = vpop.xlane.xlu0 %1068
        %1070 = vadd.xlane.f32.xlu0 %v1040
        %v1071 = vpop.xlane.xlu0 %1070
        %1072 = vadd.xlane.f32.xlu0 %v1041
        %v1073 = vpop.xlane.xlu0 %1072
        %v1074 = vrcp.pop 128.0
        %v1075 = vmul.f32 %v1043, %v1074
        %v1076 = vmul.f32 %v1045, %v1074
        %v1077 = vmul.f32 %v1047, %v1074
        %v1078 = vmul.f32 %v1049, %v1074
        %v1079 = vmul.f32 %v1051, %v1074
        %v1080 = vmul.f32 %v1053, %v1074
        %v1081 = vmul.f32 %v1055, %v1074
        %v1082 = vmul.f32 %v1057, %v1074
        %v1083 = vmul.f32 %v1059, %v1074
        %v1084 = vmul.f32 %v1061, %v1074
        %v1085 = vmul.f32 %v1063, %v1074
        %v1086 = vmul.f32 %v1065, %v1074
        %v1087 = vmul.f32 %v1067, %v1074
        %v1088 = vmul.f32 %v1069, %v1074
        %v1089 = vmul.f32 %v1071, %v1074
        %v1090 = vmul.f32 %v1073, %v1074
        %v1091 = vsub.f32 %v1026, %v1075
        %v1092 = vsub.f32 %v1027, %v1076
        %v1093 = vsub.f32 %v1028, %v1077
        %v1094 = vsub.f32 %v1029, %v1078
        %v1095 = vsub.f32 %v1030, %v1079
        %v1096 = vsub.f32 %v1031, %v1080
        %v1097 = vsub.f32 %v1032, %v1081
        %v1098 = vsub.f32 %v1033, %v1082
        %v1099 = vsub.f32 %v1034, %v1083
        %v1100 = vsub.f32 %v1035, %v1084
        %v1101 = vsub.f32 %v1036, %v1085
        %v1102 = vsub.f32 %v1037, %v1086
        %v1103 = vsub.f32 %v1038, %v1087
        %v1104 = vsub.f32 %v1039, %v1088
        %v1105 = vsub.f32 %v1040, %v1089
        %v1106 = vsub.f32 %v1041, %v1090
        %v1107 = vmul.f32 %v1091, %v1091
        %v1108 = vmul.f32 %v1092, %v1092
        %v1109 = vmul.f32 %v1093, %v1093
        %v1110 = vmul.f32 %v1094, %v1094
        %v1111 = vmul.f32 %v1095, %v1095
        %v1112 = vmul.f32 %v1096, %v1096
        %v1113 = vmul.f32 %v1097, %v1097
        %v1114 = vmul.f32 %v1098, %v1098
        %v1115 = vmul.f32 %v1099, %v1099
        %v1116 = vmul.f32 %v1100, %v1100
        %v1117 = vmul.f32 %v1101, %v1101
        %v1118 = vmul.f32 %v1102, %v1102
        %v1119 = vmul.f32 %v1103, %v1103
        %v1120 = vmul.f32 %v1104, %v1104
        %v1121 = vmul.f32 %v1105, %v1105
        %v1122 = vmul.f32 %v1106, %v1106
        %1123 = vadd.xlane.f32.xlu0 %v1107
        %v1124 = vpop.xlane.xlu0 %1123
        %1125 = vadd.xlane.f32.xlu0 %v1108
        %v1126 = vpop.xlane.xlu0 %1125
        %1127 = vadd.xlane.f32.xlu0 %v1109
        %v1128 = vpop.xlane.xlu0 %1127
        %1129 = vadd.xlane.f32.xlu0 %v1110
        %v1130 = vpop.xlane.xlu0 %1129
        %1131 = vadd.xlane.f32.xlu0 %v1111
        %v1132 = vpop.xlane.xlu0 %1131
        %1133 = vadd.xlane.f32.xlu0 %v1112
        %v1134 = vpop.xlane.xlu0 %1133
        %1135 = vadd.xlane.f32.xlu0 %v1113
        %v1136 = vpop.xlane.xlu0 %1135
        %1137 = vadd.xlane.f32.xlu0 %v1114
        %v1138 = vpop.xlane.xlu0 %1137
        %1139 = vadd.xlane.f32.xlu0 %v1115
        %v1140 = vpop.xlane.xlu0 %1139
        %1141 = vadd.xlane.f32.xlu0 %v1116
        %v1142 = vpop.xlane.xlu0 %1141
        %1143 = vadd.xlane.f32.xlu0 %v1117
        %v1144 = vpop.xlane.xlu0 %1143
        %1145 = vadd.xlane.f32.xlu0 %v1118
        %v1146 = vpop.xlane.xlu0 %1145
        %1147 = vadd.xlane.f32.xlu0 %v1119
        %v1148 = vpop.xlane.xlu0 %1147
        %1149 = vadd.xlane.f32.xlu0 %v1120
        %v1150 = vpop.xlane.xlu0 %1149
        %1151 = vadd.xlane.f32.xlu0 %v1121
        %v1152 = vpop.xlane.xlu0 %1151
        %1153 = vadd.xlane.f32.xlu0 %v1122
        %v1154 = vpop.xlane.xlu0 %1153
        %v1155 = vmul.f32 %v1124, %v1074
        %v1156 = vmul.f32 %v1126, %v1074
        %v1157 = vmul.f32 %v1128, %v1074
        %v1158 = vmul.f32 %v1130, %v1074
        %v1159 = vmul.f32 %v1132, %v1074
        %v1160 = vmul.f32 %v1134, %v1074
        %v1161 = vmul.f32 %v1136, %v1074
        %v1162 = vmul.f32 %v1138, %v1074
        %v1163 = vmul.f32 %v1140, %v1074
        %v1164 = vmul.f32 %v1142, %v1074
        %v1165 = vmul.f32 %v1144, %v1074
        %v1166 = vmul.f32 %v1146, %v1074
        %v1167 = vmul.f32 %v1148, %v1074
        %v1168 = vmul.f32 %v1150, %v1074
        %v1169 = vmul.f32 %v1152, %v1074
        %v1170 = vmul.f32 %v1154, %v1074
        %v1171 = vadd.f32 %v1155, 1e-05
        %v1172 = vadd.f32 %v1156, 1e-05
        %v1173 = vadd.f32 %v1157, 1e-05
        %v1174 = vadd.f32 %v1158, 1e-05
        %v1175 = vadd.f32 %v1159, 1e-05
        %v1176 = vadd.f32 %v1160, 1e-05
        %v1177 = vadd.f32 %v1161, 1e-05
        %v1178 = vadd.f32 %v1162, 1e-05
        %v1179 = vadd.f32 %v1163, 1e-05
        %v1180 = vadd.f32 %v1164, 1e-05
        %v1181 = vadd.f32 %v1165, 1e-05
        %v1182 = vadd.f32 %v1166, 1e-05
        %v1183 = vadd.f32 %v1167, 1e-05
        %v1184 = vadd.f32 %v1168, 1e-05
        %v1185 = vadd.f32 %v1169, 1e-05
        %v1186 = vadd.f32 %v1170, 1e-05
        %v1187 = vrsqrt.pop %v1171
        %v1188 = vrsqrt.pop %v1172
        %v1189 = vrsqrt.pop %v1173
        %v1190 = vrsqrt.pop %v1174
        %v1191 = vrsqrt.pop %v1175
        %v1192 = vrsqrt.pop %v1176
        %v1193 = vrsqrt.pop %v1177
        %v1194 = vrsqrt.pop %v1178
        %v1195 = vrsqrt.pop %v1179
        %v1196 = vrsqrt.pop %v1180
        %v1197 = vrsqrt.pop %v1181
        %v1198 = vrsqrt.pop %v1182
        %v1199 = vrsqrt.pop %v1183
        %v1200 = vrsqrt.pop %v1184
        %v1201 = vrsqrt.pop %v1185
        %v1202 = vrsqrt.pop %v1186
        %v1203 = vmul.f32 %v1091, %v1187
        %v1204 = vmul.f32 %v1092, %v1188
        %v1205 = vmul.f32 %v1093, %v1189
        %v1206 = vmul.f32 %v1094, %v1190
        %v1207 = vmul.f32 %v1095, %v1191
        %v1208 = vmul.f32 %v1096, %v1192
        %v1209 = vmul.f32 %v1097, %v1193
        %v1210 = vmul.f32 %v1098, %v1194
        %v1211 = vmul.f32 %v1099, %v1195
        %v1212 = vmul.f32 %v1100, %v1196
        %v1213 = vmul.f32 %v1101, %v1197
        %v1214 = vmul.f32 %v1102, %v1198
        %v1215 = vmul.f32 %v1103, %v1199
        %v1216 = vmul.f32 %v1104, %v1200
        %v1217 = vmul.f32 %v1105, %v1201
        %v1218 = vmul.f32 %v1106, %v1202
        %v1219 = vld [vmem:[%s7] sm:$0x1]
        %v1221 = vlaneseq
        %v1222 = vshrl.u32 %v1221, 7
        %v1223 = vsub.s32 0, %v1222
        %v1224 = vrot.slane %v1219, %v1223
        %v1226 = vmul.f32 %v1203, %v1224
        %v1227 = vmul.f32 %v1204, %v1224
        %v1228 = vmul.f32 %v1205, %v1224
        %v1229 = vmul.f32 %v1206, %v1224
        %v1230 = vmul.f32 %v1207, %v1224
        %v1231 = vmul.f32 %v1208, %v1224
        %v1232 = vmul.f32 %v1209, %v1224
        %v1233 = vmul.f32 %v1210, %v1224
        %v1234 = vmul.f32 %v1211, %v1224
        %v1235 = vmul.f32 %v1212, %v1224
        %v1236 = vmul.f32 %v1213, %v1224
        %v1237 = vmul.f32 %v1214, %v1224
        %v1238 = vmul.f32 %v1215, %v1224
        %v1239 = vmul.f32 %v1216, %v1224
        %v1240 = vmul.f32 %v1217, %v1224
        %v1241 = vmul.f32 %v1218, %v1224
        %v1242 = vld [vmem:[%s8] sm:$0x1]
        %v1244 = vlaneseq
        %v1245 = vshrl.u32 %v1244, 7
        %v1246 = vsub.s32 0, %v1245
        %v1247 = vrot.slane %v1242, %v1246
        %v1249 = vadd.f32 %v1226, %v1247
        %v1250 = vadd.f32 %v1227, %v1247
        %v1251 = vadd.f32 %v1228, %v1247
        %v1252 = vadd.f32 %v1229, %v1247
        %v1253 = vadd.f32 %v1230, %v1247
        %v1254 = vadd.f32 %v1231, %v1247
        %v1255 = vadd.f32 %v1232, %v1247
        %v1256 = vadd.f32 %v1233, %v1247
        %v1257 = vadd.f32 %v1234, %v1247
        %v1258 = vadd.f32 %v1235, %v1247
        %v1259 = vadd.f32 %v1236, %v1247
        %v1260 = vadd.f32 %v1237, %v1247
        %v1261 = vadd.f32 %v1238, %v1247
        %v1262 = vadd.f32 %v1239, %v1247
        %v1263 = vadd.f32 %v1240, %v1247
        %v1264 = vadd.f32 %v1241, %v1247
        %1265 = vst [vmem:[%s376] sm:$0xff] %v1249
        %1266 = vst [vmem:[%s376 + $0x8] sm:$0xff] %v1250
        %1267 = vst [vmem:[%s376 + $0x10] sm:$0xff] %v1251
        %1268 = vst [vmem:[%s376 + $0x18] sm:$0xff] %v1252
        %1269 = vst [vmem:[%s376 + $0x20] sm:$0xff] %v1253
        %1270 = vst [vmem:[%s376 + $0x28] sm:$0xff] %v1254
        %1271 = vst [vmem:[%s376 + $0x30] sm:$0xff] %v1255
        %1272 = vst [vmem:[%s376 + $0x38] sm:$0xff] %v1256
        %1273 = vst [vmem:[%s376 + $0x40] sm:$0xff] %v1257
        %1274 = vst [vmem:[%s376 + $0x48] sm:$0xff] %v1258
        %1275 = vst [vmem:[%s376 + $0x50] sm:$0xff] %v1259
        %1276 = vst [vmem:[%s376 + $0x58] sm:$0xff] %v1260
        %1277 = vst [vmem:[%s376 + $0x60] sm:$0xff] %v1261
        %1278 = vst [vmem:[%s376 + $0x68] sm:$0xff] %v1262
        %1279 = vst [vmem:[%s376 + $0x70] sm:$0xff] %v1263
        %1280 = vst [vmem:[%s376 + $0x78] sm:$0xff] %v1264
        %s1281 = sand.u32 %s251, 1
        %s1282 = scalar_lea.sflag [#allocation3], %s1281
        %s1283 = sand.u32 %s251, 1
        %s1284 = smul.addr %s1283, 128
        %s1285 = scalar_lea.vmem [#allocation2], %s1284
        // Predicated region
        $region57: #{tpavi_forward.1} parent=55 // pred_check
          %p1286 = pneg %p261
        $region58: #{tpavi_forward.1} parent=55 // pred_check_branch
          %1288 = sbr.rel (%p1286) target = $region60
        $region59: #{tpavi_forward.1} parent=55 // pred_region
          %s1289 = smul.u32 16, %s28
          %s1291 = ssub.s32 2048, 2048
          %1292 = vsyncadd %s1282, %s1291
          %s1293 = smul.addr %s27, 32
          %s1294 = sadd.s32 %s1289, %s1293
          %s1295 = smul.addr %s1294, 128
          %s1296 = scalar_lea.hbm %s9, %s1295
          %s1297 = sshll.u32 %s1285, 4
          %s1298 = int_to_ptr.vmem [resolvable:$true] %s1297
          %1303 = dma.vmem_to_hbm [thread:$0]  %s1298, 2048, %s1296, %s1282, 128, 128, 8
        $region60: #{tpavi_forward.1} parent=55 // pred_fallthru
          _
      $region56: #{tpavi_forward.1} parent=5 // pred_fallthru
        _
      %p1304 = scmp.le.s32.totalorder 2, %s18
      // Predicated region
      $region61: #{tpavi_forward.1} parent=5 // pred_check
        %p1305 = pneg %p1304
      $region62: #{tpavi_forward.1} parent=5 // pred_check_branch
        %1307 = sbr.rel (%p1305) target = $region64
      $region63: #{tpavi_forward.1} parent=5 // pred_region
        %s1308 = ssub.s32 %s18, 2
        // Predicated region
        $region65: #{tpavi_forward.1} parent=63 // pred_check
          %p1309 = pneg %p267
        $region66: #{tpavi_forward.1} parent=63 // pred_check_branch
          %1311 = sbr.rel (%p1309) target = $region68
        $region67: #{tpavi_forward.1} parent=63 // pred_region
          %s1312 = sand.u32 %s252, 1
          %s1313 = scalar_lea.sflag [#allocation3], %s1312
          %s1314 = sand.u32 %s252, 1
          %s1315 = smul.addr %s1314, 128
          %s1316 = scalar_lea.vmem [#allocation2], %s1315
          %1317 = dma.done %s1313, 2048
        $region68: #{tpavi_forward.1} parent=63 // pred_fallthru
          _
      $region64: #{tpavi_forward.1} parent=5 // pred_fallthru
        _
    $region6: #{tpavi_forward.1} parent=1 // loop_footer
      %s22 = sadd.s32 1, %s18
    $region7: #{tpavi_forward.1} parent=1 // loop_footer_branch
      %17 = sbr.rel target = $region3
    $region8: #{tpavi_forward.1} parent=1 // loop_exit
      _
    %1318 = vsyncpa [#allocation3], 1
    %s1319 = scalar_lea.sflag [#allocation3], 1
    %1320 = vsyncpa %s1319, 1

</llo_original>
